<compile_context>
chip_gen: v6e
topology: v6e:2x2x1
jax: 0.10.0
libtpu: 0.0.40
codegen_flags: <defaults>
</compile_context>

<pallas_src>
import jax
import jax.numpy as jnp
from jax.experimental import pallas as pl
from jax.experimental.pallas import tpu as pltpu


_CompilerParams = getattr(pltpu, "CompilerParams", None) or getattr(
    pltpu, "TPUCompilerParams"
)


def _round_up(x: int, m: int) -> int:
    return ((x + m - 1) // m) * m


def _pick_vmem_limit() -> int:
    """Generation-aware scoped-VMEM limit (bytes)."""
    try:
        kind = jax.devices()[0].device_kind.lower()
    except Exception:
        kind = ""
    if ("v5" in kind) or ("v6" in kind):
        return 96 * 1024 * 1024      # 128 MiB physical VMEM on v5e/v6e
    if "v7" in kind:
        return 48 * 1024 * 1024      # 64 MiB physical VMEM on v7x
    return 32 * 1024 * 1024          # conservative default for unknown chips


def _make_kernel(group: int, use_highest: bool):
    prec = jax.lax.Precision.HIGHEST if use_highest else None

    def kernel(idx_ref, table_ref, out_ref):
        # idx_ref:   (TM, G) int32, slot g already offset by g*V
        # table_ref: (G*V, G*D) block-diagonal replicated table (VMEM resident)
        # out_ref:   (TM, G*D) -- G embedding rows packed along lanes
        tm = idx_ref.shape[0]
        gv = table_ref.shape[0]
        idx = idx_ref[...]
        col = jax.lax.broadcasted_iota(jnp.int32, (tm, gv), 1)
        match = idx[:, 0:1] == col
        for g in range(1, group):                      # small static unroll
            match = jnp.logical_or(match, idx[:, g:g + 1] == col)
        one_hot = match.astype(table_ref.dtype)
        # Exactly one nonzero product per output element -> exact in the output
        # dtype; no f32 accumulator or cast pass needed.  HIGHEST only for f32
        # tables (bf16 tables are exact with a single default MXU pass).
        out_ref[...] = jnp.dot(
            one_hot,
            table_ref[...],
            preferred_element_type=out_ref.dtype,
            precision=prec,
        )

    return kernel


def _table_spec(shape, single_buffer: bool):
    index_map = lambda i: (0, 0)
    if single_buffer:
        try:
            # Constant index_map => never needs double buffering.
            return pl.BlockSpec(shape, index_map, pipeline_mode=pl.Buffered(1))
        except Exception:
            pass
    return pl.BlockSpec(shape, index_map)


def _choose_block_rows(rows_pad, v_in, d_in, itemsize, sub, vmem_limit, table_bytes):
    """Row tile from an honest per-step VMEM budget."""
    # Per packed row, per grid step:
    #   output block (double buffered, lane padded):   2 * rup(G*D,128) * isz
    #   index block  (double buffered, pads to 128):   2 * 128 * 4
    #   one-hot + compare/iota temporaries:            rup(G*V,128) * (isz + 8)
    bytes_per_row = (2 * _round_up(d_in, 128) * itemsize
                     + 2 * 128 * 4
                     + _round_up(v_in, 128) * (itemsize + 8))
    budget = min(24 * 1024 * 1024,
                 max(vmem_limit - 2 * table_bytes - 4 * 1024 * 1024,
                     2 * 1024 * 1024))
    tm = budget // max(bytes_per_row, 1)
    tm = max(sub, min(tm, 4096, rows_pad))
    tm = (tm // sub) * sub
    # Keep >= 2 grid steps when possible so both v7x TensorCores get work.
    if rows_pad >= 2 * sub:
        tm = min(tm, max(sub, (rows_pad // 2) // sub * sub))
    # Make tm divide rows_pad: no ragged tail, no cdiv remainder.
    while rows_pad % tm:
        tm -= sub
    return tm


def embedding_forward(x_idx, table, block_rows=None):
    """x_idx: (N, L) integer indices, table: (V, D) -> (N, L, D)."""
    N, L = x_idx.shape
    V, D = table.shape
    R = N * L
    dtype = table.dtype
    itemsize = jnp.dtype(dtype).itemsize

    # Sublane multiple for the output dtype (f32: 8, bf16: 16, int8/fp8: 32).
    sub = {4: 8, 2: 16, 1: 32}.get(itemsize, 8)

    # Lane-dense output packing factor.
    if D < 128 and 128 % D == 0:
        group = min(128 // D, 8)
    else:
        group = 1

    flat_idx = x_idx.reshape(R).astype(jnp.int32)
    rows = -(-R // group)
    tok_pad = rows * group - R
    if tok_pad:
        flat_idx = jnp.pad(flat_idx, (0, tok_pad))

    # Slot g of a packed row compares against columns [g*V, (g+1)*V).
    offs = (jnp.arange(group, dtype=jnp.int32) * V)[None, :]
    idx2d = flat_idx.reshape(rows, group) + offs

    # Block-diagonal replicated table (identity when group == 1).
    table_in = jnp.kron(jnp.eye(group, dtype=dtype), table) if group > 1 else table
    v_in, d_in = group * V, group * D
    table_bytes = v_in * d_in * itemsize

    rows_pad = _round_up(rows, sub)
    if rows_pad != rows:
        idx2d = jnp.pad(idx2d, ((0, rows_pad - rows), (0, 0)))

    vmem_limit = _pick_vmem_limit()
    tm = (block_rows if block_rows is not None
          else _choose_block_rows(rows_pad, v_in, d_in, itemsize, sub,
                                  vmem_limit, table_bytes))

    grid = (rows_pad // tm,)
    kernel = _make_kernel(group, use_highest=(dtype == jnp.float32))

    def run(single_buffer_table):
        return pl.pallas_call(
            kernel,
            out_shape=jax.ShapeDtypeStruct((rows_pad, d_in), dtype),
            grid=grid,
            in_specs=[
                pl.BlockSpec((tm, group), lambda i: (i, 0)),
                _table_spec((v_in, d_in), single_buffer_table),
            ],
            out_specs=pl.BlockSpec((tm, d_in), lambda i: (i, 0)),
            compiler_params=_CompilerParams(
                dimension_semantics=("parallel",),
                vmem_limit_bytes=vmem_limit,
            ),
        )(idx2d, table_in)

    try:
        out = run(True)
    except Exception:
        out = run(False)   # fall back to a default (double-buffered) table spec

    total_tokens = rows_pad * group
    if total_tokens == R:
        return out.reshape(N, L, D)      # free: row-major orders match exactly
    # TODO(synk): for shapes that need padding this slice costs an extra output
    # pass in XLA; callers with N*L a multiple of group*sublane avoid it.
    return out.reshape(total_tokens, D)[:R].reshape(N, L, D)


if __name__ == "__main__":
    # Shapes implied by the module's forward: x is (N, L) byte indices,
    # embeddings is (V, D) with V = indexer.size().
    N, L = 2, 8          # batch, sequence length
    V, D = 16, 32        # vocab (indexer size), embedding dim

    key = jax.random.PRNGKey(0)
    k_table, k_idx = jax.random.split(key)

    table = jax.random.normal(k_table, (V, D), dtype=jnp.float32)          # torch.randn analog
    x = jax.random.randint(k_idx, (N, L), 0, V, dtype=jnp.int32).astype(jnp.uint8)  # ByteTensor

    out = embedding_forward(x, table)
    out = jax.block_until_ready(out)

    # Reference: plain embedding gather (torch.index_select analog).
    ref = jnp.take(table, x.reshape(-1).astype(jnp.int32), axis=0).reshape(N, L, D)
    assert out.shape == (N, L, D)
    assert out.dtype == table.dtype
    assert jnp.allclose(out, ref, atol=1e-6, rtol=1e-6), "Pallas output mismatch vs reference"

    print("KERNEL_OK")
</pallas_src>

<mosaic_0001>
module attributes {stable_mosaic.version = 11 : i64} {
  func.func @kernel(%arg0: i32, %arg1: memref<8x4xi32, #tpu.memory_space<vmem>>, %arg2: memref<64x128xf32, #tpu.memory_space<vmem>>, %arg3: memref<8x128xf32, #tpu.memory_space<vmem>>) attributes {dimension_semantics = [#tpu.dimension_semantics<parallel>], iteration_bounds = array<i64: 1>, scalar_prefetch = 0 : i64, scratch_operands = 0 : i64, tpu.core_type = #tpu.core_type<tc>, window_params = [{transform_indices = @transform_0, window_bounds = array<i64: 8, 4>}, {pipeline_mode = #tpu.pipeline_mode<synchronous>, transform_indices = @transform_1, window_bounds = array<i64: 64, 128>}, {transform_indices = @transform_2, window_bounds = array<i64: 8, 128>}]} {
    %c0 = arith.constant 0 : index
    %c0_0 = arith.constant 0 : index
    %0 = vector.load %arg1[%c0, %c0_0] : memref<8x4xi32, #tpu.memory_space<vmem>>, vector<8x4xi32>
    %1 = tpu.iota {dimensions = array<i32: 1>} : vector<8x64xi32>
    %2 = vector.extract_strided_slice %0 {offsets = [0, 0], sizes = [8, 1], strides = [1, 1]} : vector<8x4xi32> to vector<8x1xi32>
    %3 = vector.broadcast %2 : vector<8x1xi32> to vector<8x64xi32>
    %4 = arith.cmpi eq, %3, %1 : vector<8x64xi32>
    %5 = vector.extract_strided_slice %0 {offsets = [0, 1], sizes = [8, 1], strides = [1, 1]} : vector<8x4xi32> to vector<8x1xi32>
    %6 = vector.broadcast %5 : vector<8x1xi32> to vector<8x64xi32>
    %7 = arith.cmpi eq, %6, %1 : vector<8x64xi32>
    %8 = arith.ori %4, %7 : vector<8x64xi1>
    %9 = vector.extract_strided_slice %0 {offsets = [0, 2], sizes = [8, 1], strides = [1, 1]} : vector<8x4xi32> to vector<8x1xi32>
    %10 = vector.broadcast %9 : vector<8x1xi32> to vector<8x64xi32>
    %11 = arith.cmpi eq, %10, %1 : vector<8x64xi32>
    %12 = arith.ori %8, %11 : vector<8x64xi1>
    %13 = vector.extract_strided_slice %0 {offsets = [0, 3], sizes = [8, 1], strides = [1, 1]} : vector<8x4xi32> to vector<8x1xi32>
    %14 = vector.broadcast %13 : vector<8x1xi32> to vector<8x64xi32>
    %15 = arith.cmpi eq, %14, %1 : vector<8x64xi32>
    %16 = arith.ori %12, %15 : vector<8x64xi1>
    %17 = arith.extui %16 : vector<8x64xi1> to vector<8x64xi32>
    %18 = arith.sitofp %17 : vector<8x64xi32> to vector<8x64xf32>
    %c0_1 = arith.constant 0 : index
    %c0_2 = arith.constant 0 : index
    %19 = vector.load %arg2[%c0_1, %c0_2] : memref<64x128xf32, #tpu.memory_space<vmem>>, vector<64x128xf32>
    %cst = arith.constant dense<0.000000e+00> : vector<8x128xf32>
    %20 = tpu.matmul %18, %19, %cst {dimension_numbers = #tpu.dot_dimension_numbers<[1], [0], [0], [1], [0, 0, 1, 1], [], []>, precision = #tpu.contract_precision<fp32>} : vector<8x64xf32>, vector<64x128xf32>, vector<8x128xf32> -> vector<8x128xf32>
    %c0_3 = arith.constant 0 : index
    %c0_4 = arith.constant 0 : index
    %21 = vector.load %arg3[%c0_3, %c0_4] : memref<8x128xf32, #tpu.memory_space<vmem>>, vector<8x128xf32>
    tpu.vector_store %arg3[%c0_3, %c0_4], %20 {strides = array<i32>} : memref<8x128xf32, #tpu.memory_space<vmem>>, vector<8x128xf32>,
    return
  }
  func.func @transform_0(%arg0: i32) -> (i32, i32) {
    %c0_i32 = arith.constant 0 : i32
    %c0_i32_0 = arith.constant 0 : i32
    return %arg0, %c0_i32 : i32, i32
  }
  func.func @transform_1(%arg0: i32) -> (i32, i32) {
    %c0_i32 = arith.constant 0 : i32
    %c0_i32_0 = arith.constant 0 : i32
    %c0_i32_1 = arith.constant 0 : i32
    return %c0_i32, %c0_i32_0 : i32, i32
  }
  func.func @transform_2(%arg0: i32) -> (i32, i32) {
    %c0_i32 = arith.constant 0 : i32
    %c0_i32_0 = arith.constant 0 : i32
    return %arg0, %c0_i32 : i32, i32
  }
}

module attributes {stable_mosaic.version = 11 : i64} {
  func.func @kernel(%arg0: i32, %arg1: memref<8x4xi32, #tpu.memory_space<vmem>>, %arg2: memref<64x128xf32, #tpu.memory_space<vmem>>, %arg3: memref<8x128xf32, #tpu.memory_space<vmem>>) attributes {dimension_semantics = [#tpu.dimension_semantics<parallel>], iteration_bounds = array<i64: 1>, scalar_prefetch = 0 : i64, scratch_operands = 0 : i64, tpu.core_type = #tpu.core_type<tc>, window_params = [{transform_indices = @transform_0, window_bounds = array<i64: 8, 4>}, {pipeline_mode = #tpu.pipeline_mode<synchronous>, transform_indices = @transform_1, window_bounds = array<i64: 64, 128>}, {transform_indices = @transform_2, window_bounds = array<i64: 8, 128>}]} {
    %c0 = arith.constant 0 : index
    %c0_0 = arith.constant 0 : index
    %0 = vector.load %arg1[%c0, %c0_0] : memref<8x4xi32, #tpu.memory_space<vmem>>, vector<8x4xi32>
    %1 = tpu.iota {dimensions = array<i32: 1>} : vector<8x64xi32>
    %2 = vector.extract_strided_slice %0 {offsets = [0, 0], sizes = [8, 1], strides = [1, 1]} : vector<8x4xi32> to vector<8x1xi32>
    %3 = vector.broadcast %2 : vector<8x1xi32> to vector<8x64xi32>
    %4 = arith.cmpi eq, %3, %1 : vector<8x64xi32>
    %5 = vector.extract_strided_slice %0 {offsets = [0, 1], sizes = [8, 1], strides = [1, 1]} : vector<8x4xi32> to vector<8x1xi32>
    %6 = vector.broadcast %5 : vector<8x1xi32> to vector<8x64xi32>
    %7 = arith.cmpi eq, %6, %1 : vector<8x64xi32>
    %8 = arith.ori %4, %7 : vector<8x64xi1>
    %9 = vector.extract_strided_slice %0 {offsets = [0, 2], sizes = [8, 1], strides = [1, 1]} : vector<8x4xi32> to vector<8x1xi32>
    %10 = vector.broadcast %9 : vector<8x1xi32> to vector<8x64xi32>
    %11 = arith.cmpi eq, %10, %1 : vector<8x64xi32>
    %12 = arith.ori %8, %11 : vector<8x64xi1>
    %13 = vector.extract_strided_slice %0 {offsets = [0, 3], sizes = [8, 1], strides = [1, 1]} : vector<8x4xi32> to vector<8x1xi32>
    %14 = vector.broadcast %13 : vector<8x1xi32> to vector<8x64xi32>
    %15 = arith.cmpi eq, %14, %1 : vector<8x64xi32>
    %16 = arith.ori %12, %15 : vector<8x64xi1>
    %17 = arith.extui %16 : vector<8x64xi1> to vector<8x64xi32>
    %18 = arith.sitofp %17 : vector<8x64xi32> to vector<8x64xf32>
    %c0_1 = arith.constant 0 : index
    %c0_2 = arith.constant 0 : index
    %19 = vector.load %arg2[%c0_1, %c0_2] : memref<64x128xf32, #tpu.memory_space<vmem>>, vector<64x128xf32>
    %cst = arith.constant dense<0.000000e+00> : vector<8x128xf32>
    %20 = tpu.matmul %18, %19, %cst {dimension_numbers = #tpu.dot_dimension_numbers<[1], [0], [0], [1], [0, 0, 1, 1], [], []>, precision = #tpu.contract_precision<fp32>} : vector<8x64xf32>, vector<64x128xf32>, vector<8x128xf32> -> vector<8x128xf32>
    %c0_3 = arith.constant 0 : index
    %c0_4 = arith.constant 0 : index
    %21 = vector.load %arg3[%c0_3, %c0_4] : memref<8x128xf32, #tpu.memory_space<vmem>>, vector<8x128xf32>
    tpu.vector_store %arg3[%c0_3, %c0_4], %20 {strides = array<i32>} : memref<8x128xf32, #tpu.memory_space<vmem>>, vector<8x128xf32>,
    return
  }
  func.func @transform_0(%arg0: i32) -> (i32, i32) {
    %c0_i32 = arith.constant 0 : i32
    %c0_i32_0 = arith.constant 0 : i32
    return %arg0, %c0_i32 : i32, i32
  }
  func.func @transform_1(%arg0: i32) -> (i32, i32) {
    %c0_i32 = arith.constant 0 : i32
    %c0_i32_0 = arith.constant 0 : i32
    %c0_i32_1 = arith.constant 0 : i32
    return %c0_i32, %c0_i32_0 : i32, i32
  }
  func.func @transform_2(%arg0: i32) -> (i32, i32) {
    %c0_i32 = arith.constant 0 : i32
    %c0_i32_0 = arith.constant 0 : i32
    return %arg0, %c0_i32 : i32, i32
  }
}

</mosaic_0001>

<llo_original>
// kernel: tpu_custom_call.1
$region0: #{tpu_custom_call.1}
  #allocation0 [shape = 'u32[]', space=smem, size = 0x4, offset = 0x4, fixed_abs, tag = 'smem constant byte address 0x4 - core index']
  #allocation1 [shape = 'u32[144,128]{1,0:T(1,128)}', space=vmem, size = 0x12000, scoped, tag = 'internal scratch']
  %s0 = inlined_call_operand.vmem [shape: s32[8,4], index: 0, kind: input, shape index: {}]
  %s1 = inlined_call_operand.hbm [shape: f32[64,128], index: 1, kind: input, shape index: {}]
  %s2 = inlined_call_operand.hbm [shape: f32[8,128], index: 2, kind: output, shape index: {}]
  %s3 = sld [smem:[#allocation0]]
  $region22: #{tpu_custom_call.1} parent=0
    _
  %s5 = ssub.s32 1, %s3
  %s6 = scalar_select 0, %s5, %s3
  $region1: #{tpu_custom_call.1} parent=0
    #allocation2 [shape = 'u8[32768]{0}', space=vmem, size = 0x8000, scoped, tag = 'input window, operand 1, single buffered']
    #allocation3 [shape = 's32[1]{0}', space=sflag, size = 0x4, scoped, tag = 'scoped memory for tpu_custom_call.1']
    #allocation4 [shape = 's32[1]{0}', space=sflag, size = 0x4, scoped, tag = 'scoped memory for tpu_custom_call.1']
    #allocation5 [shape = 'u8[4096]{0}', space=vmem, size = 0x1000, scoped, tag = 'output window, operand 0, single buffered']
    %7 = vsyncpa [#allocation3], 0
    %8 = vsyncpa [#allocation4], 0
    // Predicated region
    $region2: #{tpu_custom_call.1} parent=1 // pred_check
      _
    $region3: #{tpu_custom_call.1} parent=1 // pred_check_branch
      %10 = sbr.rel (0) target = $region5
    $region4: #{tpu_custom_call.1} parent=1 // pred_region
      _
    $region5: #{tpu_custom_call.1} parent=1 // pred_fallthru
      _
    // Predicated region
    $region6: #{tpu_custom_call.1} parent=1 // pred_check
      _
    $region7: #{tpu_custom_call.1} parent=1 // pred_check_branch
      %12 = sbr.rel (0) target = $region9
    $region8: #{tpu_custom_call.1} parent=1 // pred_region
      %s14 = ssub.s32 1024, 1024
      %15 = vsyncadd [#allocation3], %s14
      %s16 = sshll.u32 [#allocation2], 4
      %s17 = int_to_ptr.vmem [resolvable:$true] %s16
      %22 = dma.hbm_to_vmem [thread:$0]  %s1, 1024, %s17, [#allocation3], 128, 128, 8
    $region9: #{tpu_custom_call.1} parent=1 // pred_fallthru
      _
    // Predicated region
    $region10: #{tpu_custom_call.1} parent=1 // pred_check
      _
    $region11: #{tpu_custom_call.1} parent=1 // pred_check_branch
      %24 = sbr.rel (0) target = $region13
    $region12: #{tpu_custom_call.1} parent=1 // pred_region
      %25 = dma.done [#allocation3], 1024
    $region13: #{tpu_custom_call.1} parent=1 // pred_fallthru
      _
    %v26 = vld [vmem:[%s0] sm:$0xff]
    %v27 = vlaneseq
    %v28 = vand.u32 %v27, 127
    %29 = vset.pattern.permute.xlu0 0
    %30 = vperm.xlu0 %29, %v26
    %v31 = vpop.permute.xlu0 %30
    %vm32 = vcmp.eq.s32.totalorder %v31, %v28
    %33 = vset.pattern.permute.xlu0 1
    %34 = vperm.xlu0 %33, %v26
    %v35 = vpop.permute.xlu0 %34
    %vm36 = vcmp.eq.s32.totalorder %v35, %v28
    %vm37 = vmor %vm32, %vm36
    %38 = vset.pattern.permute.xlu0 2
    %39 = vperm.xlu0 %38, %v26
    %v40 = vpop.permute.xlu0 %39
    %vm41 = vcmp.eq.s32.totalorder %v40, %v28
    %vm42 = vmor %vm37, %vm41
    %43 = vset.pattern.permute.xlu0 3
    %44 = vperm.xlu0 %43, %v26
    %v45 = vpop.permute.xlu0 %44
    %vm46 = vcmp.eq.s32.totalorder %v45, %v28
    %vm47 = vmor %vm42, %vm46
    %v48 = vsel %vm47, 1, 0
    %v49 = vcvt.s32.f32 %v48
    %v50 = vld [vmem:[#allocation2] sm:$0xff]
    %v51 = vld [vmem:[#allocation2 + $0x8] sm:$0xff]
    %v52 = vld [vmem:[#allocation2 + $0x10] sm:$0xff]
    %v53 = vld [vmem:[#allocation2 + $0x18] sm:$0xff]
    %v54 = vld [vmem:[#allocation2 + $0x20] sm:$0xff]
    %v55 = vld [vmem:[#allocation2 + $0x28] sm:$0xff]
    %v56 = vld [vmem:[#allocation2 + $0x30] sm:$0xff]
    %v57 = vld [vmem:[#allocation2 + $0x38] sm:$0xff]
    %vm58 = vcmask 523264
    %v60 = vsel %vm58, %v49, 0
    %62 = vmatprep.subr.mxu0 0.0
    %63 = vmatpush1.msra.mxu0 0.0
    %64 = vmatprep.subr.mxu0 0.0
    %65 = vmatpush1.msra.mxu0 0.0
    %66 = vmatprep.subr.mxu0 0.0
    %67 = vmatpush1.msra.mxu0 0.0
    %68 = vmatprep.subr.mxu0 0.0
    %69 = vmatpush1.msra.mxu0 0.0
    %70 = vmatprep.subr.mxu0 0.0
    %71 = vmatpush1.msra.mxu0 0.0
    %72 = vmatprep.subr.mxu0 0.0
    %73 = vmatpush1.msra.mxu0 0.0
    %74 = vmatprep.subr.mxu0 0.0
    %75 = vmatpush1.msra.mxu0 0.0
    %76 = vmatprep.subr.mxu0 0.0
    %77 = vmatpush1.msra.mxu0 0.0
    %78 = vmatprep.subr.mxu0 0.0
    %v79 = vand.u32 %v57, 4294901760
    %80 = vmatpush1.msra.mxu0 %v79
    %81 = vmatprep.subr.mxu0 0.0
    %v82 = vand.u32 %v56, 4294901760
    %83 = vmatpush1.msra.mxu0 %v82
    %84 = vmatprep.subr.mxu0 0.0
    %v85 = vand.u32 %v55, 4294901760
    %86 = vmatpush1.msra.mxu0 %v85
    %87 = vmatprep.subr.mxu0 0.0
    %v88 = vand.u32 %v54, 4294901760
    %89 = vmatpush1.msra.mxu0 %v88
    %90 = vmatprep.subr.mxu0 0.0
    %v91 = vand.u32 %v53, 4294901760
    %92 = vmatpush1.msra.mxu0 %v91
    %93 = vmatprep.subr.mxu0 0.0
    %v94 = vand.u32 %v52, 4294901760
    %95 = vmatpush1.msra.mxu0 %v94
    %96 = vmatprep.subr.mxu0 0.0
    %v97 = vand.u32 %v51, 4294901760
    %98 = vmatpush1.msra.mxu0 %v97
    %99 = vmatprep.subr.mxu0 0.0
    %v100 = vand.u32 %v50, 4294901760
    %101 = vmatpush1.msra.mxu0 %v100
    %102 = vmatprep.subr.mxu0 0.0
    %103 = vmatpush2.msra.mxu0 0.0
    %104 = vmatprep.subr.mxu0 0.0
    %105 = vmatpush2.msra.mxu0 0.0
    %106 = vmatprep.subr.mxu0 0.0
    %107 = vmatpush2.msra.mxu0 0.0
    %108 = vmatprep.subr.mxu0 0.0
    %109 = vmatpush2.msra.mxu0 0.0
    %110 = vmatprep.subr.mxu0 0.0
    %111 = vmatpush2.msra.mxu0 0.0
    %112 = vmatprep.subr.mxu0 0.0
    %113 = vmatpush2.msra.mxu0 0.0
    %114 = vmatprep.subr.mxu0 0.0
    %115 = vmatpush2.msra.mxu0 0.0
    %116 = vmatprep.subr.mxu0 0.0
    %117 = vmatpush2.msra.mxu0 0.0
    %118 = vmatprep.subr.mxu0 0.0
    %119 = vmatpush2.msra.mxu0 0.0
    %120 = vmatprep.subr.mxu0 0.0
    %121 = vmatpush2.msra.mxu0 0.0
    %122 = vmatprep.subr.mxu0 0.0
    %123 = vmatpush2.msra.mxu0 0.0
    %124 = vmatprep.subr.mxu0 0.0
    %125 = vmatpush2.msra.mxu0 0.0
    %126 = vmatprep.subr.mxu0 0.0
    %127 = vmatpush2.msra.mxu0 0.0
    %128 = vmatprep.subr.mxu0 0.0
    %129 = vmatpush2.msra.mxu0 0.0
    %130 = vmatprep.subr.mxu0 0.0
    %131 = vmatpush2.msra.mxu0 0.0
    %132 = vmatprep.subr.mxu0 0.0
    %133 = vmatpush2.msra.mxu0 0.0
    %134 = vmatprep.mubr.f32.mxu0 0.0
    %v135 = vand.u32 %v60, 4294901760
    %v136 = vsub.f32 %v60, %v135
    %v137 = vand.u32 %v136, 4294901760
    %v138 = vsub.f32 %v136, %v137
    %v139 = vand.u32 %v138, 4294901760
    %140 = vmatmul.mubr.f32.gmra.mxu0 %v139
    %v141 = vpop.f32.mrf.mxu0
    %v142 = vadd.f32 0.0, %v141
    %v143 = vpop.f32.mrf.mxu0
    %144 = vdwg.mxu0
    %145 = vmatprep.subr.mxu0 0.0
    %146 = vmatpush1.msra.mxu0 0.0
    %147 = vmatprep.subr.mxu0 0.0
    %148 = vmatpush1.msra.mxu0 0.0
    %149 = vmatprep.subr.mxu0 0.0
    %150 = vmatpush1.msra.mxu0 0.0
    %151 = vmatprep.subr.mxu0 0.0
    %152 = vmatpush1.msra.mxu0 0.0
    %153 = vmatprep.subr.mxu0 0.0
    %154 = vmatpush1.msra.mxu0 0.0
    %155 = vmatprep.subr.mxu0 0.0
    %156 = vmatpush1.msra.mxu0 0.0
    %157 = vmatprep.subr.mxu0 0.0
    %158 = vmatpush1.msra.mxu0 0.0
    %159 = vmatprep.subr.mxu0 0.0
    %160 = vmatpush1.msra.mxu0 0.0
    %161 = vmatprep.subr.mxu0 0.0
    %v162 = vand.u32 %v57, 4294901760
    %v163 = vsub.f32 %v57, %v162
    %v164 = vand.u32 %v163, 4294901760
    %v165 = vsub.f32 %v163, %v164
    %v166 = vand.u32 %v165, 4294901760
    %167 = vmatpush1.msra.mxu0 %v166
    %168 = vmatprep.subr.mxu0 0.0
    %v169 = vand.u32 %v56, 4294901760
    %v170 = vsub.f32 %v56, %v169
    %v171 = vand.u32 %v170, 4294901760
    %v172 = vsub.f32 %v170, %v171
    %v173 = vand.u32 %v172, 4294901760
    %174 = vmatpush1.msra.mxu0 %v173
    %175 = vmatprep.subr.mxu0 0.0
    %v176 = vand.u32 %v55, 4294901760
    %v177 = vsub.f32 %v55, %v176
    %v178 = vand.u32 %v177, 4294901760
    %v179 = vsub.f32 %v177, %v178
    %v180 = vand.u32 %v179, 4294901760
    %181 = vmatpush1.msra.mxu0 %v180
    %182 = vmatprep.subr.mxu0 0.0
    %v183 = vand.u32 %v54, 4294901760
    %v184 = vsub.f32 %v54, %v183
    %v185 = vand.u32 %v184, 4294901760
    %v186 = vsub.f32 %v184, %v185
    %v187 = vand.u32 %v186, 4294901760
    %188 = vmatpush1.msra.mxu0 %v187
    %189 = vmatprep.subr.mxu0 0.0
    %v190 = vand.u32 %v53, 4294901760
    %v191 = vsub.f32 %v53, %v190
    %v192 = vand.u32 %v191, 4294901760
    %v193 = vsub.f32 %v191, %v192
    %v194 = vand.u32 %v193, 4294901760
    %195 = vmatpush1.msra.mxu0 %v194
    %196 = vmatprep.subr.mxu0 0.0
    %v197 = vand.u32 %v52, 4294901760
    %v198 = vsub.f32 %v52, %v197
    %v199 = vand.u32 %v198, 4294901760
    %v200 = vsub.f32 %v198, %v199
    %v201 = vand.u32 %v200, 4294901760
    %202 = vmatpush1.msra.mxu0 %v201
    %203 = vmatprep.subr.mxu0 0.0
    %v204 = vand.u32 %v51, 4294901760
    %v205 = vsub.f32 %v51, %v204
    %v206 = vand.u32 %v205, 4294901760
    %v207 = vsub.f32 %v205, %v206
    %v208 = vand.u32 %v207, 4294901760
    %209 = vmatpush1.msra.mxu0 %v208
    %210 = vmatprep.subr.mxu0 0.0
    %v211 = vand.u32 %v50, 4294901760
    %v212 = vsub.f32 %v50, %v211
    %v213 = vand.u32 %v212, 4294901760
    %v214 = vsub.f32 %v212, %v213
    %v215 = vand.u32 %v214, 4294901760
    %216 = vmatpush1.msra.mxu0 %v215
    %217 = vmatprep.subr.mxu0 0.0
    %218 = vmatpush2.msra.mxu0 0.0
    %219 = vmatprep.subr.mxu0 0.0
    %220 = vmatpush2.msra.mxu0 0.0
    %221 = vmatprep.subr.mxu0 0.0
    %222 = vmatpush2.msra.mxu0 0.0
    %223 = vmatprep.subr.mxu0 0.0
    %224 = vmatpush2.msra.mxu0 0.0
    %225 = vmatprep.subr.mxu0 0.0
    %226 = vmatpush2.msra.mxu0 0.0
    %227 = vmatprep.subr.mxu0 0.0
    %228 = vmatpush2.msra.mxu0 0.0
    %229 = vmatprep.subr.mxu0 0.0
    %230 = vmatpush2.msra.mxu0 0.0
    %231 = vmatprep.subr.mxu0 0.0
    %232 = vmatpush2.msra.mxu0 0.0
    %233 = vmatprep.subr.mxu0 0.0
    %234 = vmatpush2.msra.mxu0 0.0
    %235 = vmatprep.subr.mxu0 0.0
    %236 = vmatpush2.msra.mxu0 0.0
    %237 = vmatprep.subr.mxu0 0.0
    %238 = vmatpush2.msra.mxu0 0.0
    %239 = vmatprep.subr.mxu0 0.0
    %240 = vmatpush2.msra.mxu0 0.0
    %241 = vmatprep.subr.mxu0 0.0
    %242 = vmatpush2.msra.mxu0 0.0
    %243 = vmatprep.subr.mxu0 0.0
    %244 = vmatpush2.msra.mxu0 0.0
    %245 = vmatprep.subr.mxu0 0.0
    %246 = vmatpush2.msra.mxu0 0.0
    %247 = vmatprep.subr.mxu0 0.0
    %248 = vmatpush2.msra.mxu0 0.0
    %249 = vmatprep.mubr.f32.mxu0 0.0
    %v250 = vand.u32 %v60, 4294901760
    %251 = vmatmul.mubr.f32.gmra.mxu0 %v250
    %v252 = vpop.f32.mrf.mxu0
    %v253 = vadd.f32 %v142, %v252
    %v254 = vpop.f32.mrf.mxu0
    %255 = vdwg.mxu0
    %256 = vmatprep.subr.mxu0 0.0
    %257 = vmatpush1.msra.mxu0 0.0
    %258 = vmatprep.subr.mxu0 0.0
    %259 = vmatpush1.msra.mxu0 0.0
    %260 = vmatprep.subr.mxu0 0.0
    %261 = vmatpush1.msra.mxu0 0.0
    %262 = vmatprep.subr.mxu0 0.0
    %263 = vmatpush1.msra.mxu0 0.0
    %264 = vmatprep.subr.mxu0 0.0
    %265 = vmatpush1.msra.mxu0 0.0
    %266 = vmatprep.subr.mxu0 0.0
    %267 = vmatpush1.msra.mxu0 0.0
    %268 = vmatprep.subr.mxu0 0.0
    %269 = vmatpush1.msra.mxu0 0.0
    %270 = vmatprep.subr.mxu0 0.0
    %271 = vmatpush1.msra.mxu0 0.0
    %272 = vmatprep.subr.mxu0 0.0
    %v273 = vand.u32 %v57, 4294901760
    %v274 = vsub.f32 %v57, %v273
    %275 = vmatpush1.msra.mxu0 %v274
    %276 = vmatprep.subr.mxu0 0.0
    %v277 = vand.u32 %v56, 4294901760
    %v278 = vsub.f32 %v56, %v277
    %279 = vmatpush1.msra.mxu0 %v278
    %280 = vmatprep.subr.mxu0 0.0
    %v281 = vand.u32 %v55, 4294901760
    %v282 = vsub.f32 %v55, %v281
    %283 = vmatpush1.msra.mxu0 %v282
    %284 = vmatprep.subr.mxu0 0.0
    %v285 = vand.u32 %v54, 4294901760
    %v286 = vsub.f32 %v54, %v285
    %287 = vmatpush1.msra.mxu0 %v286
    %288 = vmatprep.subr.mxu0 0.0
    %v289 = vand.u32 %v53, 4294901760
    %v290 = vsub.f32 %v53, %v289
    %291 = vmatpush1.msra.mxu0 %v290
    %292 = vmatprep.subr.mxu0 0.0
    %v293 = vand.u32 %v52, 4294901760
    %v294 = vsub.f32 %v52, %v293
    %295 = vmatpush1.msra.mxu0 %v294
    %296 = vmatprep.subr.mxu0 0.0
    %v297 = vand.u32 %v51, 4294901760
    %v298 = vsub.f32 %v51, %v297
    %299 = vmatpush1.msra.mxu0 %v298
    %300 = vmatprep.subr.mxu0 0.0
    %v301 = vand.u32 %v50, 4294901760
    %v302 = vsub.f32 %v50, %v301
    %303 = vmatpush1.msra.mxu0 %v302
    %304 = vmatprep.subr.mxu0 0.0
    %305 = vmatpush2.msra.mxu0 0.0
    %306 = vmatprep.subr.mxu0 0.0
    %307 = vmatpush2.msra.mxu0 0.0
    %308 = vmatprep.subr.mxu0 0.0
    %309 = vmatpush2.msra.mxu0 0.0
    %310 = vmatprep.subr.mxu0 0.0
    %311 = vmatpush2.msra.mxu0 0.0
    %312 = vmatprep.subr.mxu0 0.0
    %313 = vmatpush2.msra.mxu0 0.0
    %314 = vmatprep.subr.mxu0 0.0
    %315 = vmatpush2.msra.mxu0 0.0
    %316 = vmatprep.subr.mxu0 0.0
    %317 = vmatpush2.msra.mxu0 0.0
    %318 = vmatprep.subr.mxu0 0.0
    %319 = vmatpush2.msra.mxu0 0.0
    %320 = vmatprep.subr.mxu0 0.0
    %321 = vmatpush2.msra.mxu0 0.0
    %322 = vmatprep.subr.mxu0 0.0
    %323 = vmatpush2.msra.mxu0 0.0
    %324 = vmatprep.subr.mxu0 0.0
    %325 = vmatpush2.msra.mxu0 0.0
    %326 = vmatprep.subr.mxu0 0.0
    %327 = vmatpush2.msra.mxu0 0.0
    %328 = vmatprep.subr.mxu0 0.0
    %329 = vmatpush2.msra.mxu0 0.0
    %330 = vmatprep.subr.mxu0 0.0
    %331 = vmatpush2.msra.mxu0 0.0
    %332 = vmatprep.subr.mxu0 0.0
    %333 = vmatpush2.msra.mxu0 0.0
    %334 = vmatprep.subr.mxu0 0.0
    %335 = vmatpush2.msra.mxu0 0.0
    %336 = vmatprep.mubr.f32.mxu0 0.0
    %v337 = vand.u32 %v60, 4294901760
    %v338 = vsub.f32 %v60, %v337
    %339 = vmatmul.mubr.f32.gmra.mxu0 %v338
    %v340 = vpop.f32.mrf.mxu0
    %v341 = vadd.f32 %v253, %v340
    %v342 = vpop.f32.mrf.mxu0
    %343 = vdwg.mxu0
    %344 = vmatprep.subr.mxu0 0.0
    %345 = vmatpush1.msra.mxu0 0.0
    %346 = vmatprep.subr.mxu0 0.0
    %347 = vmatpush1.msra.mxu0 0.0
    %348 = vmatprep.subr.mxu0 0.0
    %349 = vmatpush1.msra.mxu0 0.0
    %350 = vmatprep.subr.mxu0 0.0
    %351 = vmatpush1.msra.mxu0 0.0
    %352 = vmatprep.subr.mxu0 0.0
    %353 = vmatpush1.msra.mxu0 0.0
    %354 = vmatprep.subr.mxu0 0.0
    %355 = vmatpush1.msra.mxu0 0.0
    %356 = vmatprep.subr.mxu0 0.0
    %357 = vmatpush1.msra.mxu0 0.0
    %358 = vmatprep.subr.mxu0 0.0
    %359 = vmatpush1.msra.mxu0 0.0
    %360 = vmatprep.subr.mxu0 0.0
    %v361 = vand.u32 %v57, 4294901760
    %362 = vmatpush1.msra.mxu0 %v361
    %363 = vmatprep.subr.mxu0 0.0
    %v364 = vand.u32 %v56, 4294901760
    %365 = vmatpush1.msra.mxu0 %v364
    %366 = vmatprep.subr.mxu0 0.0
    %v367 = vand.u32 %v55, 4294901760
    %368 = vmatpush1.msra.mxu0 %v367
    %369 = vmatprep.subr.mxu0 0.0
    %v370 = vand.u32 %v54, 4294901760
    %371 = vmatpush1.msra.mxu0 %v370
    %372 = vmatprep.subr.mxu0 0.0
    %v373 = vand.u32 %v53, 4294901760
    %374 = vmatpush1.msra.mxu0 %v373
    %375 = vmatprep.subr.mxu0 0.0
    %v376 = vand.u32 %v52, 4294901760
    %377 = vmatpush1.msra.mxu0 %v376
    %378 = vmatprep.subr.mxu0 0.0
    %v379 = vand.u32 %v51, 4294901760
    %380 = vmatpush1.msra.mxu0 %v379
    %381 = vmatprep.subr.mxu0 0.0
    %v382 = vand.u32 %v50, 4294901760
    %383 = vmatpush1.msra.mxu0 %v382
    %384 = vmatprep.subr.mxu0 0.0
    %385 = vmatpush2.msra.mxu0 0.0
    %386 = vmatprep.subr.mxu0 0.0
    %387 = vmatpush2.msra.mxu0 0.0
    %388 = vmatprep.subr.mxu0 0.0
    %389 = vmatpush2.msra.mxu0 0.0
    %390 = vmatprep.subr.mxu0 0.0
    %391 = vmatpush2.msra.mxu0 0.0
    %392 = vmatprep.subr.mxu0 0.0
    %393 = vmatpush2.msra.mxu0 0.0
    %394 = vmatprep.subr.mxu0 0.0
    %395 = vmatpush2.msra.mxu0 0.0
    %396 = vmatprep.subr.mxu0 0.0
    %397 = vmatpush2.msra.mxu0 0.0
    %398 = vmatprep.subr.mxu0 0.0
    %399 = vmatpush2.msra.mxu0 0.0
    %400 = vmatprep.subr.mxu0 0.0
    %401 = vmatpush2.msra.mxu0 0.0
    %402 = vmatprep.subr.mxu0 0.0
    %403 = vmatpush2.msra.mxu0 0.0
    %404 = vmatprep.subr.mxu0 0.0
    %405 = vmatpush2.msra.mxu0 0.0
    %406 = vmatprep.subr.mxu0 0.0
    %407 = vmatpush2.msra.mxu0 0.0
    %408 = vmatprep.subr.mxu0 0.0
    %409 = vmatpush2.msra.mxu0 0.0
    %410 = vmatprep.subr.mxu0 0.0
    %411 = vmatpush2.msra.mxu0 0.0
    %412 = vmatprep.subr.mxu0 0.0
    %413 = vmatpush2.msra.mxu0 0.0
    %414 = vmatprep.subr.mxu0 0.0
    %415 = vmatpush2.msra.mxu0 0.0
    %416 = vmatprep.mubr.f32.mxu0 0.0
    %v417 = vand.u32 %v60, 4294901760
    %v418 = vsub.f32 %v60, %v417
    %v419 = vand.u32 %v418, 4294901760
    %420 = vmatmul.mubr.f32.gmra.mxu0 %v419
    %v421 = vpop.f32.mrf.mxu0
    %v422 = vadd.f32 %v341, %v421
    %v423 = vpop.f32.mrf.mxu0
    %424 = vdwg.mxu0
    %425 = vmatprep.subr.mxu0 0.0
    %426 = vmatpush1.msra.mxu0 0.0
    %427 = vmatprep.subr.mxu0 0.0
    %428 = vmatpush1.msra.mxu0 0.0
    %429 = vmatprep.subr.mxu0 0.0
    %430 = vmatpush1.msra.mxu0 0.0
    %431 = vmatprep.subr.mxu0 0.0
    %432 = vmatpush1.msra.mxu0 0.0
    %433 = vmatprep.subr.mxu0 0.0
    %434 = vmatpush1.msra.mxu0 0.0
    %435 = vmatprep.subr.mxu0 0.0
    %436 = vmatpush1.msra.mxu0 0.0
    %437 = vmatprep.subr.mxu0 0.0
    %438 = vmatpush1.msra.mxu0 0.0
    %439 = vmatprep.subr.mxu0 0.0
    %440 = vmatpush1.msra.mxu0 0.0
    %441 = vmatprep.subr.mxu0 0.0
    %v442 = vand.u32 %v57, 4294901760
    %v443 = vsub.f32 %v57, %v442
    %v444 = vand.u32 %v443, 4294901760
    %445 = vmatpush1.msra.mxu0 %v444
    %446 = vmatprep.subr.mxu0 0.0
    %v447 = vand.u32 %v56, 4294901760
    %v448 = vsub.f32 %v56, %v447
    %v449 = vand.u32 %v448, 4294901760
    %450 = vmatpush1.msra.mxu0 %v449
    %451 = vmatprep.subr.mxu0 0.0
    %v452 = vand.u32 %v55, 4294901760
    %v453 = vsub.f32 %v55, %v452
    %v454 = vand.u32 %v453, 4294901760
    %455 = vmatpush1.msra.mxu0 %v454
    %456 = vmatprep.subr.mxu0 0.0
    %v457 = vand.u32 %v54, 4294901760
    %v458 = vsub.f32 %v54, %v457
    %v459 = vand.u32 %v458, 4294901760
    %460 = vmatpush1.msra.mxu0 %v459
    %461 = vmatprep.subr.mxu0 0.0
    %v462 = vand.u32 %v53, 4294901760
    %v463 = vsub.f32 %v53, %v462
    %v464 = vand.u32 %v463, 4294901760
    %465 = vmatpush1.msra.mxu0 %v464
    %466 = vmatprep.subr.mxu0 0.0
    %v467 = vand.u32 %v52, 4294901760
    %v468 = vsub.f32 %v52, %v467
    %v469 = vand.u32 %v468, 4294901760
    %470 = vmatpush1.msra.mxu0 %v469
    %471 = vmatprep.subr.mxu0 0.0
    %v472 = vand.u32 %v51, 4294901760
    %v473 = vsub.f32 %v51, %v472
    %v474 = vand.u32 %v473, 4294901760
    %475 = vmatpush1.msra.mxu0 %v474
    %476 = vmatprep.subr.mxu0 0.0
    %v477 = vand.u32 %v50, 4294901760
    %v478 = vsub.f32 %v50, %v477
    %v479 = vand.u32 %v478, 4294901760
    %480 = vmatpush1.msra.mxu0 %v479
    %481 = vmatprep.subr.mxu0 0.0
    %482 = vmatpush2.msra.mxu0 0.0
    %483 = vmatprep.subr.mxu0 0.0
    %484 = vmatpush2.msra.mxu0 0.0
    %485 = vmatprep.subr.mxu0 0.0
    %486 = vmatpush2.msra.mxu0 0.0
    %487 = vmatprep.subr.mxu0 0.0
    %488 = vmatpush2.msra.mxu0 0.0
    %489 = vmatprep.subr.mxu0 0.0
    %490 = vmatpush2.msra.mxu0 0.0
    %491 = vmatprep.subr.mxu0 0.0
    %492 = vmatpush2.msra.mxu0 0.0
    %493 = vmatprep.subr.mxu0 0.0
    %494 = vmatpush2.msra.mxu0 0.0
    %495 = vmatprep.subr.mxu0 0.0
    %496 = vmatpush2.msra.mxu0 0.0
    %497 = vmatprep.subr.mxu0 0.0
    %498 = vmatpush2.msra.mxu0 0.0
    %499 = vmatprep.subr.mxu0 0.0
    %500 = vmatpush2.msra.mxu0 0.0
    %501 = vmatprep.subr.mxu0 0.0
    %502 = vmatpush2.msra.mxu0 0.0
    %503 = vmatprep.subr.mxu0 0.0
    %504 = vmatpush2.msra.mxu0 0.0
    %505 = vmatprep.subr.mxu0 0.0
    %506 = vmatpush2.msra.mxu0 0.0
    %507 = vmatprep.subr.mxu0 0.0
    %508 = vmatpush2.msra.mxu0 0.0
    %509 = vmatprep.subr.mxu0 0.0
    %510 = vmatpush2.msra.mxu0 0.0
    %511 = vmatprep.subr.mxu0 0.0
    %512 = vmatpush2.msra.mxu0 0.0
    %513 = vmatprep.mubr.f32.mxu0 0.0
    %v514 = vand.u32 %v60, 4294901760
    %515 = vmatmul.mubr.f32.gmra.mxu0 %v514
    %v516 = vpop.f32.mrf.mxu0
    %v517 = vadd.f32 %v422, %v516
    %v518 = vpop.f32.mrf.mxu0
    %519 = vdwg.mxu0
    %520 = vmatprep.subr.mxu0 0.0
    %521 = vmatpush1.msra.mxu0 0.0
    %522 = vmatprep.subr.mxu0 0.0
    %523 = vmatpush1.msra.mxu0 0.0
    %524 = vmatprep.subr.mxu0 0.0
    %525 = vmatpush1.msra.mxu0 0.0
    %526 = vmatprep.subr.mxu0 0.0
    %527 = vmatpush1.msra.mxu0 0.0
    %528 = vmatprep.subr.mxu0 0.0
    %529 = vmatpush1.msra.mxu0 0.0
    %530 = vmatprep.subr.mxu0 0.0
    %531 = vmatpush1.msra.mxu0 0.0
    %532 = vmatprep.subr.mxu0 0.0
    %533 = vmatpush1.msra.mxu0 0.0
    %534 = vmatprep.subr.mxu0 0.0
    %535 = vmatpush1.msra.mxu0 0.0
    %536 = vmatprep.subr.mxu0 0.0
    %v537 = vand.u32 %v57, 4294901760
    %538 = vmatpush1.msra.mxu0 %v537
    %539 = vmatprep.subr.mxu0 0.0
    %v540 = vand.u32 %v56, 4294901760
    %541 = vmatpush1.msra.mxu0 %v540
    %542 = vmatprep.subr.mxu0 0.0
    %v543 = vand.u32 %v55, 4294901760
    %544 = vmatpush1.msra.mxu0 %v543
    %545 = vmatprep.subr.mxu0 0.0
    %v546 = vand.u32 %v54, 4294901760
    %547 = vmatpush1.msra.mxu0 %v546
    %548 = vmatprep.subr.mxu0 0.0
    %v549 = vand.u32 %v53, 4294901760
    %550 = vmatpush1.msra.mxu0 %v549
    %551 = vmatprep.subr.mxu0 0.0
    %v552 = vand.u32 %v52, 4294901760
    %553 = vmatpush1.msra.mxu0 %v552
    %554 = vmatprep.subr.mxu0 0.0
    %v555 = vand.u32 %v51, 4294901760
    %556 = vmatpush1.msra.mxu0 %v555
    %557 = vmatprep.subr.mxu0 0.0
    %v558 = vand.u32 %v50, 4294901760
    %559 = vmatpush1.msra.mxu0 %v558
    %560 = vmatprep.subr.mxu0 0.0
    %561 = vmatpush2.msra.mxu0 0.0
    %562 = vmatprep.subr.mxu0 0.0
    %563 = vmatpush2.msra.mxu0 0.0
    %564 = vmatprep.subr.mxu0 0.0
    %565 = vmatpush2.msra.mxu0 0.0
    %566 = vmatprep.subr.mxu0 0.0
    %567 = vmatpush2.msra.mxu0 0.0
    %568 = vmatprep.subr.mxu0 0.0
    %569 = vmatpush2.msra.mxu0 0.0
    %570 = vmatprep.subr.mxu0 0.0
    %571 = vmatpush2.msra.mxu0 0.0
    %572 = vmatprep.subr.mxu0 0.0
    %573 = vmatpush2.msra.mxu0 0.0
    %574 = vmatprep.subr.mxu0 0.0
    %575 = vmatpush2.msra.mxu0 0.0
    %576 = vmatprep.subr.mxu0 0.0
    %577 = vmatpush2.msra.mxu0 0.0
    %578 = vmatprep.subr.mxu0 0.0
    %579 = vmatpush2.msra.mxu0 0.0
    %580 = vmatprep.subr.mxu0 0.0
    %581 = vmatpush2.msra.mxu0 0.0
    %582 = vmatprep.subr.mxu0 0.0
    %583 = vmatpush2.msra.mxu0 0.0
    %584 = vmatprep.subr.mxu0 0.0
    %585 = vmatpush2.msra.mxu0 0.0
    %586 = vmatprep.subr.mxu0 0.0
    %587 = vmatpush2.msra.mxu0 0.0
    %588 = vmatprep.subr.mxu0 0.0
    %589 = vmatpush2.msra.mxu0 0.0
    %590 = vmatprep.subr.mxu0 0.0
    %591 = vmatpush2.msra.mxu0 0.0
    %592 = vmatprep.mubr.f32.mxu0 0.0
    %v593 = vand.u32 %v60, 4294901760
    %594 = vmatmul.mubr.f32.gmra.mxu0 %v593
    %v595 = vpop.f32.mrf.mxu0
    %v596 = vadd.f32 %v517, %v595
    %v597 = vpop.f32.mrf.mxu0
    %598 = vdwg.mxu0
    %599 = vst [vmem:[#allocation5] sm:$0xff] %v596
    // Predicated region
    $region14: #{tpu_custom_call.1} parent=1 // pred_check
      _
    $region15: #{tpu_custom_call.1} parent=1 // pred_check_branch
      %601 = sbr.rel (0) target = $region17
    $region16: #{tpu_custom_call.1} parent=1 // pred_region
      %s603 = ssub.s32 128, 128
      %604 = vsyncadd [#allocation4], %s603
      %s606 = sshll.u32 [#allocation5], 4
      %s607 = int_to_ptr.vmem [resolvable:$true] %s606
      %609 = dma.vmem_to_hbm [thread:$0]  %s607, 128, %s2, [#allocation4]
    $region17: #{tpu_custom_call.1} parent=1 // pred_fallthru
      _
    // Predicated region
    $region18: #{tpu_custom_call.1} parent=1 // pred_check
      _
    $region19: #{tpu_custom_call.1} parent=1 // pred_check_branch
      %611 = sbr.rel (0) target = $region21
    $region20: #{tpu_custom_call.1} parent=1 // pred_region
      %612 = dma.done [#allocation4], 128
    $region21: #{tpu_custom_call.1} parent=1 // pred_fallthru
      _
    %613 = vsyncpa [#allocation3], 1
    %614 = vsyncpa [#allocation4], 1

// kernel: tpu_custom_call.1
$region0: #{tpu_custom_call.1}
  #allocation0 [shape = 'u32[]', space=smem, size = 0x4, offset = 0x4, fixed_abs, tag = 'smem constant byte address 0x4 - core index']
  #allocation1 [shape = 'u32[144,128]{1,0:T(1,128)}', space=vmem, size = 0x12000, scoped, tag = 'internal scratch']
  %s0 = inlined_call_operand.vmem [shape: s32[8,4], index: 0, kind: input, shape index: {}]
  %s1 = inlined_call_operand.hbm [shape: f32[64,128], index: 1, kind: input, shape index: {}]
  %s2 = inlined_call_operand.hbm [shape: f32[8,128], index: 2, kind: output, shape index: {}]
  %s3 = sld [smem:[#allocation0]]
  $region22: #{tpu_custom_call.1} parent=0
    _
  %s5 = ssub.s32 1, %s3
  %s6 = scalar_select 0, %s5, %s3
  $region1: #{tpu_custom_call.1} parent=0
    #allocation2 [shape = 'u8[32768]{0}', space=vmem, size = 0x8000, scoped, tag = 'input window, operand 1, single buffered']
    #allocation3 [shape = 's32[1]{0}', space=sflag, size = 0x4, scoped, tag = 'scoped memory for tpu_custom_call.1']
    #allocation4 [shape = 's32[1]{0}', space=sflag, size = 0x4, scoped, tag = 'scoped memory for tpu_custom_call.1']
    #allocation5 [shape = 'u8[4096]{0}', space=vmem, size = 0x1000, scoped, tag = 'output window, operand 0, single buffered']
    %7 = vsyncpa [#allocation3], 0
    %8 = vsyncpa [#allocation4], 0
    // Predicated region
    $region2: #{tpu_custom_call.1} parent=1 // pred_check
      _
    $region3: #{tpu_custom_call.1} parent=1 // pred_check_branch
      %10 = sbr.rel (0) target = $region5
    $region4: #{tpu_custom_call.1} parent=1 // pred_region
      _
    $region5: #{tpu_custom_call.1} parent=1 // pred_fallthru
      _
    // Predicated region
    $region6: #{tpu_custom_call.1} parent=1 // pred_check
      _
    $region7: #{tpu_custom_call.1} parent=1 // pred_check_branch
      %12 = sbr.rel (0) target = $region9
    $region8: #{tpu_custom_call.1} parent=1 // pred_region
      %s14 = ssub.s32 1024, 1024
      %15 = vsyncadd [#allocation3], %s14
      %s16 = sshll.u32 [#allocation2], 4
      %s17 = int_to_ptr.vmem [resolvable:$true] %s16
      %22 = dma.hbm_to_vmem [thread:$0]  %s1, 1024, %s17, [#allocation3], 128, 128, 8
    $region9: #{tpu_custom_call.1} parent=1 // pred_fallthru
      _
    // Predicated region
    $region10: #{tpu_custom_call.1} parent=1 // pred_check
      _
    $region11: #{tpu_custom_call.1} parent=1 // pred_check_branch
      %24 = sbr.rel (0) target = $region13
    $region12: #{tpu_custom_call.1} parent=1 // pred_region
      %25 = dma.done [#allocation3], 1024
    $region13: #{tpu_custom_call.1} parent=1 // pred_fallthru
      _
    %v26 = vld [vmem:[%s0] sm:$0xff]
    %v27 = vlaneseq
    %v28 = vand.u32 %v27, 127
    %29 = vset.pattern.permute.xlu0 0
    %30 = vperm.xlu0 %29, %v26
    %v31 = vpop.permute.xlu0 %30
    %vm32 = vcmp.eq.s32.totalorder %v31, %v28
    %33 = vset.pattern.permute.xlu0 1
    %34 = vperm.xlu0 %33, %v26
    %v35 = vpop.permute.xlu0 %34
    %vm36 = vcmp.eq.s32.totalorder %v35, %v28
    %vm37 = vmor %vm32, %vm36
    %38 = vset.pattern.permute.xlu0 2
    %39 = vperm.xlu0 %38, %v26
    %v40 = vpop.permute.xlu0 %39
    %vm41 = vcmp.eq.s32.totalorder %v40, %v28
    %vm42 = vmor %vm37, %vm41
    %43 = vset.pattern.permute.xlu0 3
    %44 = vperm.xlu0 %43, %v26
    %v45 = vpop.permute.xlu0 %44
    %vm46 = vcmp.eq.s32.totalorder %v45, %v28
    %vm47 = vmor %vm42, %vm46
    %v48 = vsel %vm47, 1, 0
    %v49 = vcvt.s32.f32 %v48
    %v50 = vld [vmem:[#allocation2] sm:$0xff]
    %v51 = vld [vmem:[#allocation2 + $0x8] sm:$0xff]
    %v52 = vld [vmem:[#allocation2 + $0x10] sm:$0xff]
    %v53 = vld [vmem:[#allocation2 + $0x18] sm:$0xff]
    %v54 = vld [vmem:[#allocation2 + $0x20] sm:$0xff]
    %v55 = vld [vmem:[#allocation2 + $0x28] sm:$0xff]
    %v56 = vld [vmem:[#allocation2 + $0x30] sm:$0xff]
    %v57 = vld [vmem:[#allocation2 + $0x38] sm:$0xff]
    %vm58 = vcmask 523264
    %v60 = vsel %vm58, %v49, 0
    %62 = vmatprep.subr.mxu0 0.0
    %63 = vmatpush1.msra.mxu0 0.0
    %64 = vmatprep.subr.mxu0 0.0
    %65 = vmatpush1.msra.mxu0 0.0
    %66 = vmatprep.subr.mxu0 0.0
    %67 = vmatpush1.msra.mxu0 0.0
    %68 = vmatprep.subr.mxu0 0.0
    %69 = vmatpush1.msra.mxu0 0.0
    %70 = vmatprep.subr.mxu0 0.0
    %71 = vmatpush1.msra.mxu0 0.0
    %72 = vmatprep.subr.mxu0 0.0
    %73 = vmatpush1.msra.mxu0 0.0
    %74 = vmatprep.subr.mxu0 0.0
    %75 = vmatpush1.msra.mxu0 0.0
    %76 = vmatprep.subr.mxu0 0.0
    %77 = vmatpush1.msra.mxu0 0.0
    %78 = vmatprep.subr.mxu0 0.0
    %v79 = vand.u32 %v57, 4294901760
    %80 = vmatpush1.msra.mxu0 %v79
    %81 = vmatprep.subr.mxu0 0.0
    %v82 = vand.u32 %v56, 4294901760
    %83 = vmatpush1.msra.mxu0 %v82
    %84 = vmatprep.subr.mxu0 0.0
    %v85 = vand.u32 %v55, 4294901760
    %86 = vmatpush1.msra.mxu0 %v85
    %87 = vmatprep.subr.mxu0 0.0
    %v88 = vand.u32 %v54, 4294901760
    %89 = vmatpush1.msra.mxu0 %v88
    %90 = vmatprep.subr.mxu0 0.0
    %v91 = vand.u32 %v53, 4294901760
    %92 = vmatpush1.msra.mxu0 %v91
    %93 = vmatprep.subr.mxu0 0.0
    %v94 = vand.u32 %v52, 4294901760
    %95 = vmatpush1.msra.mxu0 %v94
    %96 = vmatprep.subr.mxu0 0.0
    %v97 = vand.u32 %v51, 4294901760
    %98 = vmatpush1.msra.mxu0 %v97
    %99 = vmatprep.subr.mxu0 0.0
    %v100 = vand.u32 %v50, 4294901760
    %101 = vmatpush1.msra.mxu0 %v100
    %102 = vmatprep.subr.mxu0 0.0
    %103 = vmatpush2.msra.mxu0 0.0
    %104 = vmatprep.subr.mxu0 0.0
    %105 = vmatpush2.msra.mxu0 0.0
    %106 = vmatprep.subr.mxu0 0.0
    %107 = vmatpush2.msra.mxu0 0.0
    %108 = vmatprep.subr.mxu0 0.0
    %109 = vmatpush2.msra.mxu0 0.0
    %110 = vmatprep.subr.mxu0 0.0
    %111 = vmatpush2.msra.mxu0 0.0
    %112 = vmatprep.subr.mxu0 0.0
    %113 = vmatpush2.msra.mxu0 0.0
    %114 = vmatprep.subr.mxu0 0.0
    %115 = vmatpush2.msra.mxu0 0.0
    %116 = vmatprep.subr.mxu0 0.0
    %117 = vmatpush2.msra.mxu0 0.0
    %118 = vmatprep.subr.mxu0 0.0
    %119 = vmatpush2.msra.mxu0 0.0
    %120 = vmatprep.subr.mxu0 0.0
    %121 = vmatpush2.msra.mxu0 0.0
    %122 = vmatprep.subr.mxu0 0.0
    %123 = vmatpush2.msra.mxu0 0.0
    %124 = vmatprep.subr.mxu0 0.0
    %125 = vmatpush2.msra.mxu0 0.0
    %126 = vmatprep.subr.mxu0 0.0
    %127 = vmatpush2.msra.mxu0 0.0
    %128 = vmatprep.subr.mxu0 0.0
    %129 = vmatpush2.msra.mxu0 0.0
    %130 = vmatprep.subr.mxu0 0.0
    %131 = vmatpush2.msra.mxu0 0.0
    %132 = vmatprep.subr.mxu0 0.0
    %133 = vmatpush2.msra.mxu0 0.0
    %134 = vmatprep.mubr.f32.mxu0 0.0
    %v135 = vand.u32 %v60, 4294901760
    %v136 = vsub.f32 %v60, %v135
    %v137 = vand.u32 %v136, 4294901760
    %v138 = vsub.f32 %v136, %v137
    %v139 = vand.u32 %v138, 4294901760
    %140 = vmatmul.mubr.f32.gmra.mxu0 %v139
    %v141 = vpop.f32.mrf.mxu0
    %v142 = vadd.f32 0.0, %v141
    %v143 = vpop.f32.mrf.mxu0
    %144 = vdwg.mxu0
    %145 = vmatprep.subr.mxu0 0.0
    %146 = vmatpush1.msra.mxu0 0.0
    %147 = vmatprep.subr.mxu0 0.0
    %148 = vmatpush1.msra.mxu0 0.0
    %149 = vmatprep.subr.mxu0 0.0
    %150 = vmatpush1.msra.mxu0 0.0
    %151 = vmatprep.subr.mxu0 0.0
    %152 = vmatpush1.msra.mxu0 0.0
    %153 = vmatprep.subr.mxu0 0.0
    %154 = vmatpush1.msra.mxu0 0.0
    %155 = vmatprep.subr.mxu0 0.0
    %156 = vmatpush1.msra.mxu0 0.0
    %157 = vmatprep.subr.mxu0 0.0
    %158 = vmatpush1.msra.mxu0 0.0
    %159 = vmatprep.subr.mxu0 0.0
    %160 = vmatpush1.msra.mxu0 0.0
    %161 = vmatprep.subr.mxu0 0.0
    %v162 = vand.u32 %v57, 4294901760
    %v163 = vsub.f32 %v57, %v162
    %v164 = vand.u32 %v163, 4294901760
    %v165 = vsub.f32 %v163, %v164
    %v166 = vand.u32 %v165, 4294901760
    %167 = vmatpush1.msra.mxu0 %v166
    %168 = vmatprep.subr.mxu0 0.0
    %v169 = vand.u32 %v56, 4294901760
    %v170 = vsub.f32 %v56, %v169
    %v171 = vand.u32 %v170, 4294901760
    %v172 = vsub.f32 %v170, %v171
    %v173 = vand.u32 %v172, 4294901760
    %174 = vmatpush1.msra.mxu0 %v173
    %175 = vmatprep.subr.mxu0 0.0
    %v176 = vand.u32 %v55, 4294901760
    %v177 = vsub.f32 %v55, %v176
    %v178 = vand.u32 %v177, 4294901760
    %v179 = vsub.f32 %v177, %v178
    %v180 = vand.u32 %v179, 4294901760
    %181 = vmatpush1.msra.mxu0 %v180
    %182 = vmatprep.subr.mxu0 0.0
    %v183 = vand.u32 %v54, 4294901760
    %v184 = vsub.f32 %v54, %v183
    %v185 = vand.u32 %v184, 4294901760
    %v186 = vsub.f32 %v184, %v185
    %v187 = vand.u32 %v186, 4294901760
    %188 = vmatpush1.msra.mxu0 %v187
    %189 = vmatprep.subr.mxu0 0.0
    %v190 = vand.u32 %v53, 4294901760
    %v191 = vsub.f32 %v53, %v190
    %v192 = vand.u32 %v191, 4294901760
    %v193 = vsub.f32 %v191, %v192
    %v194 = vand.u32 %v193, 4294901760
    %195 = vmatpush1.msra.mxu0 %v194
    %196 = vmatprep.subr.mxu0 0.0
    %v197 = vand.u32 %v52, 4294901760
    %v198 = vsub.f32 %v52, %v197
    %v199 = vand.u32 %v198, 4294901760
    %v200 = vsub.f32 %v198, %v199
    %v201 = vand.u32 %v200, 4294901760
    %202 = vmatpush1.msra.mxu0 %v201
    %203 = vmatprep.subr.mxu0 0.0
    %v204 = vand.u32 %v51, 4294901760
    %v205 = vsub.f32 %v51, %v204
    %v206 = vand.u32 %v205, 4294901760
    %v207 = vsub.f32 %v205, %v206
    %v208 = vand.u32 %v207, 4294901760
    %209 = vmatpush1.msra.mxu0 %v208
    %210 = vmatprep.subr.mxu0 0.0
    %v211 = vand.u32 %v50, 4294901760
    %v212 = vsub.f32 %v50, %v211
    %v213 = vand.u32 %v212, 4294901760
    %v214 = vsub.f32 %v212, %v213
    %v215 = vand.u32 %v214, 4294901760
    %216 = vmatpush1.msra.mxu0 %v215
    %217 = vmatprep.subr.mxu0 0.0
    %218 = vmatpush2.msra.mxu0 0.0
    %219 = vmatprep.subr.mxu0 0.0
    %220 = vmatpush2.msra.mxu0 0.0
    %221 = vmatprep.subr.mxu0 0.0
    %222 = vmatpush2.msra.mxu0 0.0
    %223 = vmatprep.subr.mxu0 0.0
    %224 = vmatpush2.msra.mxu0 0.0
    %225 = vmatprep.subr.mxu0 0.0
    %226 = vmatpush2.msra.mxu0 0.0
    %227 = vmatprep.subr.mxu0 0.0
    %228 = vmatpush2.msra.mxu0 0.0
    %229 = vmatprep.subr.mxu0 0.0
    %230 = vmatpush2.msra.mxu0 0.0
    %231 = vmatprep.subr.mxu0 0.0
    %232 = vmatpush2.msra.mxu0 0.0
    %233 = vmatprep.subr.mxu0 0.0
    %234 = vmatpush2.msra.mxu0 0.0
    %235 = vmatprep.subr.mxu0 0.0
    %236 = vmatpush2.msra.mxu0 0.0
    %237 = vmatprep.subr.mxu0 0.0
    %238 = vmatpush2.msra.mxu0 0.0
    %239 = vmatprep.subr.mxu0 0.0
    %240 = vmatpush2.msra.mxu0 0.0
    %241 = vmatprep.subr.mxu0 0.0
    %242 = vmatpush2.msra.mxu0 0.0
    %243 = vmatprep.subr.mxu0 0.0
    %244 = vmatpush2.msra.mxu0 0.0
    %245 = vmatprep.subr.mxu0 0.0
    %246 = vmatpush2.msra.mxu0 0.0
    %247 = vmatprep.subr.mxu0 0.0
    %248 = vmatpush2.msra.mxu0 0.0
    %249 = vmatprep.mubr.f32.mxu0 0.0
    %v250 = vand.u32 %v60, 4294901760
    %251 = vmatmul.mubr.f32.gmra.mxu0 %v250
    %v252 = vpop.f32.mrf.mxu0
    %v253 = vadd.f32 %v142, %v252
    %v254 = vpop.f32.mrf.mxu0
    %255 = vdwg.mxu0
    %256 = vmatprep.subr.mxu0 0.0
    %257 = vmatpush1.msra.mxu0 0.0
    %258 = vmatprep.subr.mxu0 0.0
    %259 = vmatpush1.msra.mxu0 0.0
    %260 = vmatprep.subr.mxu0 0.0
    %261 = vmatpush1.msra.mxu0 0.0
    %262 = vmatprep.subr.mxu0 0.0
    %263 = vmatpush1.msra.mxu0 0.0
    %264 = vmatprep.subr.mxu0 0.0
    %265 = vmatpush1.msra.mxu0 0.0
    %266 = vmatprep.subr.mxu0 0.0
    %267 = vmatpush1.msra.mxu0 0.0
    %268 = vmatprep.subr.mxu0 0.0
    %269 = vmatpush1.msra.mxu0 0.0
    %270 = vmatprep.subr.mxu0 0.0
    %271 = vmatpush1.msra.mxu0 0.0
    %272 = vmatprep.subr.mxu0 0.0
    %v273 = vand.u32 %v57, 4294901760
    %v274 = vsub.f32 %v57, %v273
    %275 = vmatpush1.msra.mxu0 %v274
    %276 = vmatprep.subr.mxu0 0.0
    %v277 = vand.u32 %v56, 4294901760
    %v278 = vsub.f32 %v56, %v277
    %279 = vmatpush1.msra.mxu0 %v278
    %280 = vmatprep.subr.mxu0 0.0
    %v281 = vand.u32 %v55, 4294901760
    %v282 = vsub.f32 %v55, %v281
    %283 = vmatpush1.msra.mxu0 %v282
    %284 = vmatprep.subr.mxu0 0.0
    %v285 = vand.u32 %v54, 4294901760
    %v286 = vsub.f32 %v54, %v285
    %287 = vmatpush1.msra.mxu0 %v286
    %288 = vmatprep.subr.mxu0 0.0
    %v289 = vand.u32 %v53, 4294901760
    %v290 = vsub.f32 %v53, %v289
    %291 = vmatpush1.msra.mxu0 %v290
    %292 = vmatprep.subr.mxu0 0.0
    %v293 = vand.u32 %v52, 4294901760
    %v294 = vsub.f32 %v52, %v293
    %295 = vmatpush1.msra.mxu0 %v294
    %296 = vmatprep.subr.mxu0 0.0
    %v297 = vand.u32 %v51, 4294901760
    %v298 = vsub.f32 %v51, %v297
    %299 = vmatpush1.msra.mxu0 %v298
    %300 = vmatprep.subr.mxu0 0.0
    %v301 = vand.u32 %v50, 4294901760
    %v302 = vsub.f32 %v50, %v301
    %303 = vmatpush1.msra.mxu0 %v302
    %304 = vmatprep.subr.mxu0 0.0
    %305 = vmatpush2.msra.mxu0 0.0
    %306 = vmatprep.subr.mxu0 0.0
    %307 = vmatpush2.msra.mxu0 0.0
    %308 = vmatprep.subr.mxu0 0.0
    %309 = vmatpush2.msra.mxu0 0.0
    %310 = vmatprep.subr.mxu0 0.0
    %311 = vmatpush2.msra.mxu0 0.0
    %312 = vmatprep.subr.mxu0 0.0
    %313 = vmatpush2.msra.mxu0 0.0
    %314 = vmatprep.subr.mxu0 0.0
    %315 = vmatpush2.msra.mxu0 0.0
    %316 = vmatprep.subr.mxu0 0.0
    %317 = vmatpush2.msra.mxu0 0.0
    %318 = vmatprep.subr.mxu0 0.0
    %319 = vmatpush2.msra.mxu0 0.0
    %320 = vmatprep.subr.mxu0 0.0
    %321 = vmatpush2.msra.mxu0 0.0
    %322 = vmatprep.subr.mxu0 0.0
    %323 = vmatpush2.msra.mxu0 0.0
    %324 = vmatprep.subr.mxu0 0.0
    %325 = vmatpush2.msra.mxu0 0.0
    %326 = vmatprep.subr.mxu0 0.0
    %327 = vmatpush2.msra.mxu0 0.0
    %328 = vmatprep.subr.mxu0 0.0
    %329 = vmatpush2.msra.mxu0 0.0
    %330 = vmatprep.subr.mxu0 0.0
    %331 = vmatpush2.msra.mxu0 0.0
    %332 = vmatprep.subr.mxu0 0.0
    %333 = vmatpush2.msra.mxu0 0.0
    %334 = vmatprep.subr.mxu0 0.0
    %335 = vmatpush2.msra.mxu0 0.0
    %336 = vmatprep.mubr.f32.mxu0 0.0
    %v337 = vand.u32 %v60, 4294901760
    %v338 = vsub.f32 %v60, %v337
    %339 = vmatmul.mubr.f32.gmra.mxu0 %v338
    %v340 = vpop.f32.mrf.mxu0
    %v341 = vadd.f32 %v253, %v340
    %v342 = vpop.f32.mrf.mxu0
    %343 = vdwg.mxu0
    %344 = vmatprep.subr.mxu0 0.0
    %345 = vmatpush1.msra.mxu0 0.0
    %346 = vmatprep.subr.mxu0 0.0
    %347 = vmatpush1.msra.mxu0 0.0
    %348 = vmatprep.subr.mxu0 0.0
    %349 = vmatpush1.msra.mxu0 0.0
    %350 = vmatprep.subr.mxu0 0.0
    %351 = vmatpush1.msra.mxu0 0.0
    %352 = vmatprep.subr.mxu0 0.0
    %353 = vmatpush1.msra.mxu0 0.0
    %354 = vmatprep.subr.mxu0 0.0
    %355 = vmatpush1.msra.mxu0 0.0
    %356 = vmatprep.subr.mxu0 0.0
    %357 = vmatpush1.msra.mxu0 0.0
    %358 = vmatprep.subr.mxu0 0.0
    %359 = vmatpush1.msra.mxu0 0.0
    %360 = vmatprep.subr.mxu0 0.0
    %v361 = vand.u32 %v57, 4294901760
    %362 = vmatpush1.msra.mxu0 %v361
    %363 = vmatprep.subr.mxu0 0.0
    %v364 = vand.u32 %v56, 4294901760
    %365 = vmatpush1.msra.mxu0 %v364
    %366 = vmatprep.subr.mxu0 0.0
    %v367 = vand.u32 %v55, 4294901760
    %368 = vmatpush1.msra.mxu0 %v367
    %369 = vmatprep.subr.mxu0 0.0
    %v370 = vand.u32 %v54, 4294901760
    %371 = vmatpush1.msra.mxu0 %v370
    %372 = vmatprep.subr.mxu0 0.0
    %v373 = vand.u32 %v53, 4294901760
    %374 = vmatpush1.msra.mxu0 %v373
    %375 = vmatprep.subr.mxu0 0.0
    %v376 = vand.u32 %v52, 4294901760
    %377 = vmatpush1.msra.mxu0 %v376
    %378 = vmatprep.subr.mxu0 0.0
    %v379 = vand.u32 %v51, 4294901760
    %380 = vmatpush1.msra.mxu0 %v379
    %381 = vmatprep.subr.mxu0 0.0
    %v382 = vand.u32 %v50, 4294901760
    %383 = vmatpush1.msra.mxu0 %v382
    %384 = vmatprep.subr.mxu0 0.0
    %385 = vmatpush2.msra.mxu0 0.0
    %386 = vmatprep.subr.mxu0 0.0
    %387 = vmatpush2.msra.mxu0 0.0
    %388 = vmatprep.subr.mxu0 0.0
    %389 = vmatpush2.msra.mxu0 0.0
    %390 = vmatprep.subr.mxu0 0.0
    %391 = vmatpush2.msra.mxu0 0.0
    %392 = vmatprep.subr.mxu0 0.0
    %393 = vmatpush2.msra.mxu0 0.0
    %394 = vmatprep.subr.mxu0 0.0
    %395 = vmatpush2.msra.mxu0 0.0
    %396 = vmatprep.subr.mxu0 0.0
    %397 = vmatpush2.msra.mxu0 0.0
    %398 = vmatprep.subr.mxu0 0.0
    %399 = vmatpush2.msra.mxu0 0.0
    %400 = vmatprep.subr.mxu0 0.0
    %401 = vmatpush2.msra.mxu0 0.0
    %402 = vmatprep.subr.mxu0 0.0
    %403 = vmatpush2.msra.mxu0 0.0
    %404 = vmatprep.subr.mxu0 0.0
    %405 = vmatpush2.msra.mxu0 0.0
    %406 = vmatprep.subr.mxu0 0.0
    %407 = vmatpush2.msra.mxu0 0.0
    %408 = vmatprep.subr.mxu0 0.0
    %409 = vmatpush2.msra.mxu0 0.0
    %410 = vmatprep.subr.mxu0 0.0
    %411 = vmatpush2.msra.mxu0 0.0
    %412 = vmatprep.subr.mxu0 0.0
    %413 = vmatpush2.msra.mxu0 0.0
    %414 = vmatprep.subr.mxu0 0.0
    %415 = vmatpush2.msra.mxu0 0.0
    %416 = vmatprep.mubr.f32.mxu0 0.0
    %v417 = vand.u32 %v60, 4294901760
    %v418 = vsub.f32 %v60, %v417
    %v419 = vand.u32 %v418, 4294901760
    %420 = vmatmul.mubr.f32.gmra.mxu0 %v419
    %v421 = vpop.f32.mrf.mxu0
    %v422 = vadd.f32 %v341, %v421
    %v423 = vpop.f32.mrf.mxu0
    %424 = vdwg.mxu0
    %425 = vmatprep.subr.mxu0 0.0
    %426 = vmatpush1.msra.mxu0 0.0
    %427 = vmatprep.subr.mxu0 0.0
    %428 = vmatpush1.msra.mxu0 0.0
    %429 = vmatprep.subr.mxu0 0.0
    %430 = vmatpush1.msra.mxu0 0.0
    %431 = vmatprep.subr.mxu0 0.0
    %432 = vmatpush1.msra.mxu0 0.0
    %433 = vmatprep.subr.mxu0 0.0
    %434 = vmatpush1.msra.mxu0 0.0
    %435 = vmatprep.subr.mxu0 0.0
    %436 = vmatpush1.msra.mxu0 0.0
    %437 = vmatprep.subr.mxu0 0.0
    %438 = vmatpush1.msra.mxu0 0.0
    %439 = vmatprep.subr.mxu0 0.0
    %440 = vmatpush1.msra.mxu0 0.0
    %441 = vmatprep.subr.mxu0 0.0
    %v442 = vand.u32 %v57, 4294901760
    %v443 = vsub.f32 %v57, %v442
    %v444 = vand.u32 %v443, 4294901760
    %445 = vmatpush1.msra.mxu0 %v444
    %446 = vmatprep.subr.mxu0 0.0
    %v447 = vand.u32 %v56, 4294901760
    %v448 = vsub.f32 %v56, %v447
    %v449 = vand.u32 %v448, 4294901760
    %450 = vmatpush1.msra.mxu0 %v449
    %451 = vmatprep.subr.mxu0 0.0
    %v452 = vand.u32 %v55, 4294901760
    %v453 = vsub.f32 %v55, %v452
    %v454 = vand.u32 %v453, 4294901760
    %455 = vmatpush1.msra.mxu0 %v454
    %456 = vmatprep.subr.mxu0 0.0
    %v457 = vand.u32 %v54, 4294901760
    %v458 = vsub.f32 %v54, %v457
    %v459 = vand.u32 %v458, 4294901760
    %460 = vmatpush1.msra.mxu0 %v459
    %461 = vmatprep.subr.mxu0 0.0
    %v462 = vand.u32 %v53, 4294901760
    %v463 = vsub.f32 %v53, %v462
    %v464 = vand.u32 %v463, 4294901760
    %465 = vmatpush1.msra.mxu0 %v464
    %466 = vmatprep.subr.mxu0 0.0
    %v467 = vand.u32 %v52, 4294901760
    %v468 = vsub.f32 %v52, %v467
    %v469 = vand.u32 %v468, 4294901760
    %470 = vmatpush1.msra.mxu0 %v469
    %471 = vmatprep.subr.mxu0 0.0
    %v472 = vand.u32 %v51, 4294901760
    %v473 = vsub.f32 %v51, %v472
    %v474 = vand.u32 %v473, 4294901760
    %475 = vmatpush1.msra.mxu0 %v474
    %476 = vmatprep.subr.mxu0 0.0
    %v477 = vand.u32 %v50, 4294901760
    %v478 = vsub.f32 %v50, %v477
    %v479 = vand.u32 %v478, 4294901760
    %480 = vmatpush1.msra.mxu0 %v479
    %481 = vmatprep.subr.mxu0 0.0
    %482 = vmatpush2.msra.mxu0 0.0
    %483 = vmatprep.subr.mxu0 0.0
    %484 = vmatpush2.msra.mxu0 0.0
    %485 = vmatprep.subr.mxu0 0.0
    %486 = vmatpush2.msra.mxu0 0.0
    %487 = vmatprep.subr.mxu0 0.0
    %488 = vmatpush2.msra.mxu0 0.0
    %489 = vmatprep.subr.mxu0 0.0
    %490 = vmatpush2.msra.mxu0 0.0
    %491 = vmatprep.subr.mxu0 0.0
    %492 = vmatpush2.msra.mxu0 0.0
    %493 = vmatprep.subr.mxu0 0.0
    %494 = vmatpush2.msra.mxu0 0.0
    %495 = vmatprep.subr.mxu0 0.0
    %496 = vmatpush2.msra.mxu0 0.0
    %497 = vmatprep.subr.mxu0 0.0
    %498 = vmatpush2.msra.mxu0 0.0
    %499 = vmatprep.subr.mxu0 0.0
    %500 = vmatpush2.msra.mxu0 0.0
    %501 = vmatprep.subr.mxu0 0.0
    %502 = vmatpush2.msra.mxu0 0.0
    %503 = vmatprep.subr.mxu0 0.0
    %504 = vmatpush2.msra.mxu0 0.0
    %505 = vmatprep.subr.mxu0 0.0
    %506 = vmatpush2.msra.mxu0 0.0
    %507 = vmatprep.subr.mxu0 0.0
    %508 = vmatpush2.msra.mxu0 0.0
    %509 = vmatprep.subr.mxu0 0.0
    %510 = vmatpush2.msra.mxu0 0.0
    %511 = vmatprep.subr.mxu0 0.0
    %512 = vmatpush2.msra.mxu0 0.0
    %513 = vmatprep.mubr.f32.mxu0 0.0
    %v514 = vand.u32 %v60, 4294901760
    %515 = vmatmul.mubr.f32.gmra.mxu0 %v514
    %v516 = vpop.f32.mrf.mxu0
    %v517 = vadd.f32 %v422, %v516
    %v518 = vpop.f32.mrf.mxu0
    %519 = vdwg.mxu0
    %520 = vmatprep.subr.mxu0 0.0
    %521 = vmatpush1.msra.mxu0 0.0
    %522 = vmatprep.subr.mxu0 0.0
    %523 = vmatpush1.msra.mxu0 0.0
    %524 = vmatprep.subr.mxu0 0.0
    %525 = vmatpush1.msra.mxu0 0.0
    %526 = vmatprep.subr.mxu0 0.0
    %527 = vmatpush1.msra.mxu0 0.0
    %528 = vmatprep.subr.mxu0 0.0
    %529 = vmatpush1.msra.mxu0 0.0
    %530 = vmatprep.subr.mxu0 0.0
    %531 = vmatpush1.msra.mxu0 0.0
    %532 = vmatprep.subr.mxu0 0.0
    %533 = vmatpush1.msra.mxu0 0.0
    %534 = vmatprep.subr.mxu0 0.0
    %535 = vmatpush1.msra.mxu0 0.0
    %536 = vmatprep.subr.mxu0 0.0
    %v537 = vand.u32 %v57, 4294901760
    %538 = vmatpush1.msra.mxu0 %v537
    %539 = vmatprep.subr.mxu0 0.0
    %v540 = vand.u32 %v56, 4294901760
    %541 = vmatpush1.msra.mxu0 %v540
    %542 = vmatprep.subr.mxu0 0.0
    %v543 = vand.u32 %v55, 4294901760
    %544 = vmatpush1.msra.mxu0 %v543
    %545 = vmatprep.subr.mxu0 0.0
    %v546 = vand.u32 %v54, 4294901760
    %547 = vmatpush1.msra.mxu0 %v546
    %548 = vmatprep.subr.mxu0 0.0
    %v549 = vand.u32 %v53, 4294901760
    %550 = vmatpush1.msra.mxu0 %v549
    %551 = vmatprep.subr.mxu0 0.0
    %v552 = vand.u32 %v52, 4294901760
    %553 = vmatpush1.msra.mxu0 %v552
    %554 = vmatprep.subr.mxu0 0.0
    %v555 = vand.u32 %v51, 4294901760
    %556 = vmatpush1.msra.mxu0 %v555
    %557 = vmatprep.subr.mxu0 0.0
    %v558 = vand.u32 %v50, 4294901760
    %559 = vmatpush1.msra.mxu0 %v558
    %560 = vmatprep.subr.mxu0 0.0
    %561 = vmatpush2.msra.mxu0 0.0
    %562 = vmatprep.subr.mxu0 0.0
    %563 = vmatpush2.msra.mxu0 0.0
    %564 = vmatprep.subr.mxu0 0.0
    %565 = vmatpush2.msra.mxu0 0.0
    %566 = vmatprep.subr.mxu0 0.0
    %567 = vmatpush2.msra.mxu0 0.0
    %568 = vmatprep.subr.mxu0 0.0
    %569 = vmatpush2.msra.mxu0 0.0
    %570 = vmatprep.subr.mxu0 0.0
    %571 = vmatpush2.msra.mxu0 0.0
    %572 = vmatprep.subr.mxu0 0.0
    %573 = vmatpush2.msra.mxu0 0.0
    %574 = vmatprep.subr.mxu0 0.0
    %575 = vmatpush2.msra.mxu0 0.0
    %576 = vmatprep.subr.mxu0 0.0
    %577 = vmatpush2.msra.mxu0 0.0
    %578 = vmatprep.subr.mxu0 0.0
    %579 = vmatpush2.msra.mxu0 0.0
    %580 = vmatprep.subr.mxu0 0.0
    %581 = vmatpush2.msra.mxu0 0.0
    %582 = vmatprep.subr.mxu0 0.0
    %583 = vmatpush2.msra.mxu0 0.0
    %584 = vmatprep.subr.mxu0 0.0
    %585 = vmatpush2.msra.mxu0 0.0
    %586 = vmatprep.subr.mxu0 0.0
    %587 = vmatpush2.msra.mxu0 0.0
    %588 = vmatprep.subr.mxu0 0.0
    %589 = vmatpush2.msra.mxu0 0.0
    %590 = vmatprep.subr.mxu0 0.0
    %591 = vmatpush2.msra.mxu0 0.0
    %592 = vmatprep.mubr.f32.mxu0 0.0
    %v593 = vand.u32 %v60, 4294901760
    %594 = vmatmul.mubr.f32.gmra.mxu0 %v593
    %v595 = vpop.f32.mrf.mxu0
    %v596 = vadd.f32 %v517, %v595
    %v597 = vpop.f32.mrf.mxu0
    %598 = vdwg.mxu0
    %599 = vst [vmem:[#allocation5] sm:$0xff] %v596
    // Predicated region
    $region14: #{tpu_custom_call.1} parent=1 // pred_check
      _
    $region15: #{tpu_custom_call.1} parent=1 // pred_check_branch
      %601 = sbr.rel (0) target = $region17
    $region16: #{tpu_custom_call.1} parent=1 // pred_region
      %s603 = ssub.s32 128, 128
      %604 = vsyncadd [#allocation4], %s603
      %s606 = sshll.u32 [#allocation5], 4
      %s607 = int_to_ptr.vmem [resolvable:$true] %s606
      %609 = dma.vmem_to_hbm [thread:$0]  %s607, 128, %s2, [#allocation4]
    $region17: #{tpu_custom_call.1} parent=1 // pred_fallthru
      _
    // Predicated region
    $region18: #{tpu_custom_call.1} parent=1 // pred_check
      _
    $region19: #{tpu_custom_call.1} parent=1 // pred_check_branch
      %611 = sbr.rel (0) target = $region21
    $region20: #{tpu_custom_call.1} parent=1 // pred_region
      %612 = dma.done [#allocation4], 128
    $region21: #{tpu_custom_call.1} parent=1 // pred_fallthru
      _
    %613 = vsyncpa [#allocation3], 1
    %614 = vsyncpa [#allocation4], 1

</llo_original>
